<compile_context>
chip_gen: v7x
topology: tpu7x:2x2x1
jax: 0.10.0
libtpu: 0.0.40
codegen_flags: <defaults>
</compile_context>

<pallas_src>
import jax
import jax.numpy as jnp
from jax.experimental import pallas as pl
from jax.experimental.pallas import tpu as pltpu


def _yolo_kernel(pred_ref, scale_ref, offset_ref, out_ref):
    # pred_ref  : (Nblk, C5, GGp) VMEM  raw activations for Nblk (batch, anchor) slabs
    # scale_ref : (Nblk, C5, 1)   VMEM  per-slab per-row multiplicative scale
    # offset_ref: (C5, GGp)       VMEM  per-row per-lane additive offset
    # out_ref   : (Nblk, C5, GGp) VMEM
    p = pred_ref[...].astype(jnp.float32)
    row = jax.lax.broadcasted_iota(jnp.int32, p.shape, dimension=1)   # channel id
    is_wh = (row == 2) | (row == 3)
    # Single transcendental pass: exp(p) for the w/h rows, exp(-p) elsewhere,
    # then sigmoid(p) = 1 / (1 + exp(-p)).  One EUP pass + one divide instead
    # of separate full-tile exp and sigmoid.
    e = jnp.exp(jnp.where(is_wh, p, -p))
    val = jnp.where(is_wh, e, 1.0 / (1.0 + e))
    out_ref[...] = val * scale_ref[...] + offset_ref[...]


def yolo_layer_forward(x, anchors, num_classes, img_dim):
    """Pallas implementation of YOLOLayer.forward(x, targets=None, img_dim=img_dim).

    x: (B, A*(num_classes+5), G, G) float (NCHW, like the PyTorch conv output)
    returns (output, 0) with output: (B, A*G*G, num_classes+5)
    """
    B, C, G, G2 = x.shape
    assert G == G2
    A = len(anchors)
    C5 = num_classes + 5
    assert C == A * C5
    GG = G * G
    stride = float(img_dim) / float(G)
    N = B * A

    # Keep the spatial axis lane-dense (multiple of 128); pad if needed.
    GGp = ((GG + 127) // 128) * 128

    pred = x.reshape(N, C5, GG)
    if GGp != GG:
        pred = jnp.pad(pred, ((0, 0), (0, 0), (0, GGp - GG)))

    # Per-slab, per-row multiplicative scale (N, C5, 1):
    #   rows 0,1 -> stride; rows 2,3 -> scaled_anchor * stride; rows 4+ -> 1.
    sa = jnp.asarray(anchors, dtype=jnp.float32) / stride            # scaled anchors
    scale_rows = jnp.ones((A, C5), dtype=jnp.float32)
    scale_rows = scale_rows.at[:, 0].set(stride)
    scale_rows = scale_rows.at[:, 1].set(stride)
    scale_rows = scale_rows.at[:, 2].set(sa[:, 0] * stride)
    scale_rows = scale_rows.at[:, 3].set(sa[:, 1] * stride)
    scale = jnp.tile(scale_rows, (B, 1)).reshape(N, C5, 1)

    # Per-row, per-lane additive offset (C5, GGp):
    #   row 0 -> grid_x * stride, row 1 -> grid_y * stride, rest -> 0.
    gx = jnp.tile(jnp.arange(G, dtype=jnp.float32), (G,))
    gy = jnp.repeat(jnp.arange(G, dtype=jnp.float32), G)
    offset = jnp.zeros((C5, GGp), dtype=jnp.float32)
    offset = offset.at[0, :GG].set(gx * stride)
    offset = offset.at[1, :GG].set(gy * stride)

    # Block over the flattened B*A axis: biggest block that keeps double-buffered
    # input + output well under the scoped-VMEM limit (~2 MiB/block -> ~8 MiB live,
    # safe on v5e/v6e/v7x defaults), but at least 2 grid steps when possible so the
    # 'parallel' axis can shard across v7x's two TensorCores.
    slab_bytes = C5 * GGp * 4
    target = max(1, min(N, (2 << 20) // slab_bytes))
    if N > 1:
        target = min(target, -(-N // 2))
    n_blk = max(d for d in range(1, target + 1) if N % d == 0)
    grid = (N // n_blk,)

    out = pl.pallas_call(
        _yolo_kernel,
        out_shape=jax.ShapeDtypeStruct((N, C5, GGp), jnp.float32),
        grid=grid,
        in_specs=[
            pl.BlockSpec((n_blk, C5, GGp), lambda i: (i, 0, 0)),
            pl.BlockSpec((n_blk, C5, 1), lambda i: (i, 0, 0)),
            pl.BlockSpec((C5, GGp), lambda i: (0, 0)),
        ],
        out_specs=pl.BlockSpec((n_blk, C5, GGp), lambda i: (i, 0, 0)),
        compiler_params=pltpu.CompilerParams(dimension_semantics=("parallel",)),
    )(pred, scale, offset)

    out = out[:, :, :GG]                                             # drop lane pad
    # (B, A, C5, GG) -> (B, A, GG, C5) -> (B, A*GG, C5): matches torch's
    # permute(0,1,3,4,2) + view(B, -1, C5).  Left to XLA (a lane-narrow C5
    # output from the kernel would force masked partial stores).
    output = jnp.transpose(out.reshape(B, A, C5, GG), (0, 1, 3, 2)).reshape(B, A * GG, C5)
    # targets is None in this setting -> loss term is the literal 0.
    # TODO(synk): training branch (build_targets + masked MSE/BCE losses) is
    # data-dependent scatter/gather; not implemented as a kernel.
    return output, 0


def _yolo_reference(x, anchors, num_classes, img_dim):
    """Pure-JAX reference mirroring the PyTorch forward (targets=None)."""
    B, C, G, _ = x.shape
    A = len(anchors)
    C5 = num_classes + 5
    stride = float(img_dim) / float(G)
    pred = x.reshape(B, A, C5, G, G).transpose(0, 1, 3, 4, 2)        # (B,A,G,G,C5)
    sx = jax.nn.sigmoid(pred[..., 0])
    sy = jax.nn.sigmoid(pred[..., 1])
    w = pred[..., 2]
    h = pred[..., 3]
    conf = jax.nn.sigmoid(pred[..., 4])
    cls = jax.nn.sigmoid(pred[..., 5:])
    grid_x = jnp.tile(jnp.arange(G, dtype=jnp.float32), (G, 1)).reshape(1, 1, G, G)
    grid_y = jnp.tile(jnp.arange(G, dtype=jnp.float32), (G, 1)).T.reshape(1, 1, G, G)
    sa = jnp.array(anchors, dtype=jnp.float32) / stride
    aw = sa[:, 0].reshape(1, A, 1, 1)
    ah = sa[:, 1].reshape(1, A, 1, 1)
    pred_boxes = jnp.stack(
        [sx + grid_x, sy + grid_y, jnp.exp(w) * aw, jnp.exp(h) * ah], axis=-1
    )
    out = jnp.concatenate(
        [
            pred_boxes.reshape(B, -1, 4) * stride,
            conf.reshape(B, -1, 1),
            cls.reshape(B, -1, num_classes),
        ],
        axis=-1,
    )
    return out


if __name__ == "__main__":
    key = jax.random.PRNGKey(0)

    B, G = 2, 16
    num_classes = 2
    anchors = [(10.0, 13.0), (16.0, 30.0), (33.0, 23.0)]
    A = len(anchors)
    C = A * (num_classes + 5)          # 21
    img_dim = 64                       # stride = 4.0

    x = jax.random.normal(key, (B, C, G, G), dtype=jnp.float32)

    output, loss = yolo_layer_forward(x, anchors, num_classes, img_dim)
    output = jax.block_until_ready(output)

    ref = _yolo_reference(x, anchors, num_classes, img_dim)
    assert output.shape == (B, A * G * G, num_classes + 5), output.shape
    assert jnp.allclose(output, ref, atol=1e-5, rtol=1e-5), float(
        jnp.max(jnp.abs(output - ref))
    )
    assert loss == 0

    print("KERNEL_OK")
</pallas_src>

<mosaic_0001>
module attributes {stable_mosaic.version = 11 : i64} {
  func.func @_yolo_kernel(%arg0: i32, %arg1: memref<3x7x256xf32, #tpu.memory_space<vmem>>, %arg2: memref<3x7x1xf32, #tpu.memory_space<vmem>>, %arg3: memref<7x256xf32, #tpu.memory_space<vmem>>, %arg4: memref<3x7x256xf32, #tpu.memory_space<vmem>>) attributes {dimension_semantics = [#tpu.dimension_semantics<parallel>], iteration_bounds = array<i64: 2>, scalar_prefetch = 0 : i64, scratch_operands = 0 : i64, tpu.core_type = #tpu.core_type<tc>, window_params = [{transform_indices = @transform_0, window_bounds = array<i64: 3, 7, 256>}, {transform_indices = @transform_1, window_bounds = array<i64: 3, 7, 1>}, {pipeline_mode = #tpu.pipeline_mode<synchronous>, transform_indices = @transform_2, window_bounds = array<i64: 7, 256>}, {transform_indices = @transform_3, window_bounds = array<i64: 3, 7, 256>}]} {
    %c0 = arith.constant 0 : index
    %c0_0 = arith.constant 0 : index
    %c0_1 = arith.constant 0 : index
    %0 = vector.load %arg1[%c0, %c0_0, %c0_1] : memref<3x7x256xf32, #tpu.memory_space<vmem>>, vector<3x7x256xf32>
    %1 = tpu.iota {dimensions = array<i32: 1>} : vector<3x7x256xi32>
    %c2_i32 = arith.constant 2 : i32
    %2 = vector.broadcast %c2_i32 : i32 to vector<3x7x256xi32>
    %3 = arith.cmpi eq, %1, %2 : vector<3x7x256xi32>
    %c3_i32 = arith.constant 3 : i32
    %4 = vector.broadcast %c3_i32 : i32 to vector<3x7x256xi32>
    %5 = arith.cmpi eq, %1, %4 : vector<3x7x256xi32>
    %6 = arith.ori %3, %5 : vector<3x7x256xi1>
    %cst = arith.constant 0.000000e+00 : f32
    %7 = vector.broadcast %cst : f32 to vector<3x7x256xf32>
    %8 = arith.subf %7, %0 : vector<3x7x256xf32>
    %9 = arith.select %6, %0, %8 : vector<3x7x256xi1>, vector<3x7x256xf32>
    %10 = math.exp %9 : vector<3x7x256xf32>
    %cst_2 = arith.constant 1.000000e+00 : f32
    %11 = vector.broadcast %cst_2 : f32 to vector<3x7x256xf32>
    %12 = arith.addf %11, %10 : vector<3x7x256xf32>
    %cst_3 = arith.constant 1.000000e+00 : f32
    %13 = vector.broadcast %cst_3 : f32 to vector<3x7x256xf32>
    %14 = arith.divf %13, %12 : vector<3x7x256xf32>
    %15 = arith.select %6, %10, %14 : vector<3x7x256xi1>, vector<3x7x256xf32>
    %c0_4 = arith.constant 0 : index
    %c0_5 = arith.constant 0 : index
    %c0_6 = arith.constant 0 : index
    %16 = vector.load %arg2[%c0_4, %c0_5, %c0_6] : memref<3x7x1xf32, #tpu.memory_space<vmem>>, vector<3x7x1xf32>
    %17 = vector.broadcast %16 : vector<3x7x1xf32> to vector<3x7x256xf32>
    %18 = arith.mulf %15, %17 : vector<3x7x256xf32>
    %c0_7 = arith.constant 0 : index
    %c0_8 = arith.constant 0 : index
    %19 = vector.load %arg3[%c0_7, %c0_8] : memref<7x256xf32, #tpu.memory_space<vmem>>, vector<7x256xf32>
    %20 = vector.shape_cast %19 : vector<7x256xf32> to vector<1x7x256xf32>
    %21 = vector.broadcast %20 : vector<1x7x256xf32> to vector<3x7x256xf32>
    %22 = arith.addf %18, %21 : vector<3x7x256xf32>
    %c0_9 = arith.constant 0 : index
    %c0_10 = arith.constant 0 : index
    %c0_11 = arith.constant 0 : index
    %23 = vector.load %arg4[%c0_9, %c0_10, %c0_11] : memref<3x7x256xf32, #tpu.memory_space<vmem>>, vector<3x7x256xf32>
    tpu.vector_store %arg4[%c0_9, %c0_10, %c0_11], %22 {strides = array<i32>} : memref<3x7x256xf32, #tpu.memory_space<vmem>>, vector<3x7x256xf32>,
    return
  }
  func.func @transform_0(%arg0: i32) -> (i32, i32, i32) {
    %c0_i32 = arith.constant 0 : i32
    %c0_i32_0 = arith.constant 0 : i32
    %c0_i32_1 = arith.constant 0 : i32
    return %arg0, %c0_i32, %c0_i32_0 : i32, i32, i32
  }
  func.func @transform_1(%arg0: i32) -> (i32, i32, i32) {
    %c0_i32 = arith.constant 0 : i32
    %c0_i32_0 = arith.constant 0 : i32
    %c0_i32_1 = arith.constant 0 : i32
    return %arg0, %c0_i32, %c0_i32_0 : i32, i32, i32
  }
  func.func @transform_2(%arg0: i32) -> (i32, i32) {
    %c0_i32 = arith.constant 0 : i32
    %c0_i32_0 = arith.constant 0 : i32
    %c0_i32_1 = arith.constant 0 : i32
    return %c0_i32, %c0_i32_0 : i32, i32
  }
  func.func @transform_3(%arg0: i32) -> (i32, i32, i32) {
    %c0_i32 = arith.constant 0 : i32
    %c0_i32_0 = arith.constant 0 : i32
    %c0_i32_1 = arith.constant 0 : i32
    return %arg0, %c0_i32, %c0_i32_0 : i32, i32, i32
  }
}

</mosaic_0001>

<llo_original>
// kernel: tpu_custom_call.1
$region0: #{tpu_custom_call.1}
  #allocation0 [shape = 'u32[]', space=smem, size = 0x4, offset = 0x4, fixed_abs, tag = 'smem constant byte address 0x4 - core index']
  #allocation1 [shape = 'u32[144,128]{1,0:T(1,128)}', space=vmem, size = 0x12000, scoped, tag = 'internal scratch']
  %s0 = inlined_call_operand.hbm [shape: f32[6,7,256], index: 0, kind: input, shape index: {}]
  %s1 = inlined_call_operand.vmem [shape: f32[6,7,1], index: 1, kind: input, shape index: {}]
  %s2 = inlined_call_operand.vmem [shape: f32[7,256], index: 2, kind: input, shape index: {}]
  %s3 = inlined_call_operand.hbm [shape: f32[6,7,256], index: 3, kind: output, shape index: {}]
  %s4 = sld [smem:[#allocation0]]
  $region49: #{tpu_custom_call.1} parent=0
    _
  %s6 = ssub.s32 1, %s4
  %s7 = scalar_select 0, %s6, %s4
  $region1: #{tpu_custom_call.1} parent=0
    #allocation2 [shape = 'u8[49152]{0}', space=vmem, size = 0xc000, scoped, tag = 'input window, operand 0']
    #allocation3 [shape = 's32[2]{0}', space=sflag, size = 0x8, scoped, tag = 'scoped memory for tpu_custom_call.1']
    #allocation4 [shape = 's32[2]{0}', space=sflag, size = 0x8, scoped, tag = 'scoped memory for tpu_custom_call.1']
    #allocation5 [shape = 'u8[49152]{0}', space=vmem, size = 0xc000, scoped, tag = 'output window, operand 0']
    %8 = vsyncpa [#allocation3], 0
    %s9 = scalar_lea.sflag [#allocation3], 1
    %10 = vsyncpa %s9, 0
    %11 = vsyncpa [#allocation4], 0
    %s12 = scalar_lea.sflag [#allocation4], 1
    %13 = vsyncpa %s12, 0
    loop: start=0, step=1, limit=4
    $region2: #{tpu_custom_call.1} parent=1 // loop_pre_header
      _
    $region3: #{tpu_custom_call.1} parent=1 // loop_header
      %s15 = sphi 0, %s19
      %p16 = scmp.ge.s32.totalorder %s15, 4
      %s25 = sphi 0, %s27
      %s28 = sphi 0, %s25
      %s29 = sphi 0, %s28
      %s45 = sphi 0, %s29
      %s51 = sphi 0, %s53
      %s54 = sphi 0, %s51
      %s55 = sphi 0, %s54
      %s71 = sphi 0, %s55
      %s75 = sphi 0, %s75
      %s77 = sphi 0, %s75
      %s78 = sphi 0, %s77
      %s92 = sphi 0, %s78
      %s98 = sphi 0, %s100
      %s101 = sphi 0, %s98
      %s102 = sphi 0, %s101
      %s118 = sphi 0, %s102
    $region4: #{tpu_custom_call.1} parent=1 // loop_header_branch
      %18 = sbr.rel (%p16) target = $region8
    $region5: #{tpu_custom_call.1} parent=1 // loop_body
      %s20 = ssub.s32 %s15, 1
      %s21 = ssub.s32 %s15, 2
      %s22 = sadd.s32 %s15, 1
      %s23 = ssub.s32 %s15, %s22
      %p24 = scmp.eq.s32.totalorder %s23, 0
      %s26 = sadd.s32 %s25, 1
      %s27 = scalar_select %p24, %s25, %s26
      %p30 = pneg %p24
      %p31 = scmp.eq.s32.totalorder %s15, 1
      %p32 = por %p30, %p31
      %p33 = scmp.ne.s32.totalorder %s25, %s28
      %p34 = scmp.eq.s32.totalorder %s15, 0
      %p35 = por %p33, %p34
      %p36 = scmp.ne.s32.totalorder %s25, %s28
      %p37 = scmp.eq.s32.totalorder %s20, 1
      %p38 = por %p36, %p37
      %p39 = scmp.ne.s32.totalorder %s28, %s29
      %p40 = scmp.eq.s32.totalorder %s20, 0
      %p41 = por %p39, %p40
      %p42 = scmp.ne.s32.totalorder %s28, %s29
      %p43 = scmp.eq.s32.totalorder %s21, 1
      %p44 = por %p42, %p43
      %p46 = scmp.ne.s32.totalorder %s29, %s45
      %p47 = scmp.eq.s32.totalorder %s21, 0
      %p48 = por %p46, %p47
      %s49 = ssub.s32 %s15, %s22
      %p50 = scmp.eq.s32.totalorder %s49, 0
      %s52 = sadd.s32 %s51, 1
      %s53 = scalar_select %p50, %s51, %s52
      %p56 = pneg %p50
      %p57 = scmp.eq.s32.totalorder %s15, 1
      %p58 = por %p56, %p57
      %p59 = scmp.ne.s32.totalorder %s51, %s54
      %p60 = scmp.eq.s32.totalorder %s15, 0
      %p61 = por %p59, %p60
      %p62 = scmp.ne.s32.totalorder %s51, %s54
      %p63 = scmp.eq.s32.totalorder %s20, 1
      %p64 = por %p62, %p63
      %p65 = scmp.ne.s32.totalorder %s54, %s55
      %p66 = scmp.eq.s32.totalorder %s20, 0
      %p67 = por %p65, %p66
      %p68 = scmp.ne.s32.totalorder %s54, %s55
      %p69 = scmp.eq.s32.totalorder %s21, 1
      %p70 = por %p68, %p69
      %p72 = scmp.ne.s32.totalorder %s55, %s71
      %p73 = scmp.eq.s32.totalorder %s21, 0
      %p74 = por %p72, %p73
      %s76 = sadd.s32 %s75, 1
      %p79 = scmp.eq.s32.totalorder %s15, 1
      %p80 = scmp.ne.s32.totalorder %s75, %s77
      %p81 = scmp.eq.s32.totalorder %s15, 0
      %p82 = por %p80, %p81
      %p83 = scmp.ne.s32.totalorder %s75, %s77
      %p84 = scmp.eq.s32.totalorder %s20, 1
      %p85 = por %p83, %p84
      %p86 = scmp.ne.s32.totalorder %s77, %s78
      %p87 = scmp.eq.s32.totalorder %s20, 0
      %p88 = por %p86, %p87
      %p89 = scmp.ne.s32.totalorder %s77, %s78
      %p90 = scmp.eq.s32.totalorder %s21, 1
      %p91 = por %p89, %p90
      %p93 = scmp.ne.s32.totalorder %s78, %s92
      %p94 = scmp.eq.s32.totalorder %s21, 0
      %p95 = por %p93, %p94
      %s96 = ssub.s32 %s15, %s22
      %p97 = scmp.eq.s32.totalorder %s96, 0
      %s99 = sadd.s32 %s98, 1
      %s100 = scalar_select %p97, %s98, %s99
      %p103 = pneg %p97
      %p104 = scmp.eq.s32.totalorder %s15, 1
      %p105 = por %p103, %p104
      %p106 = scmp.ne.s32.totalorder %s98, %s101
      %p107 = scmp.eq.s32.totalorder %s15, 0
      %p108 = por %p106, %p107
      %p109 = scmp.ne.s32.totalorder %s98, %s101
      %p110 = scmp.eq.s32.totalorder %s20, 1
      %p111 = por %p109, %p110
      %p112 = scmp.ne.s32.totalorder %s101, %s102
      %p113 = scmp.eq.s32.totalorder %s20, 0
      %p114 = por %p112, %p113
      %p115 = scmp.ne.s32.totalorder %s101, %s102
      %p116 = scmp.eq.s32.totalorder %s21, 1
      %p117 = por %p115, %p116
      %p119 = scmp.ne.s32.totalorder %s102, %s118
      %p120 = scmp.eq.s32.totalorder %s21, 0
      %p121 = por %p119, %p120
      %p122 = scmp.le.s32.totalorder 1, %s15
      %p123 = scmp.lt.s32.totalorder %s15, 3
      %p124 = pnand %p122, %p123
      %p125 = pneg %p124
      // Predicated region
      $region9: #{tpu_custom_call.1} parent=5 // pred_check
        _
      $region10: #{tpu_custom_call.1} parent=5 // pred_check_branch
        %127 = sbr.rel (%p124) target = $region12
      $region11: #{tpu_custom_call.1} parent=5 // pred_region
        %s128 = ssub.s32 %s15, 1
        // Predicated region
        $region13: #{tpu_custom_call.1} parent=11 // pred_check
          %p129 = pneg %p88
        $region14: #{tpu_custom_call.1} parent=11 // pred_check_branch
          %131 = sbr.rel (%p129) target = $region16
        $region15: #{tpu_custom_call.1} parent=11 // pred_region
          _
        $region16: #{tpu_custom_call.1} parent=11 // pred_fallthru
          _
      $region12: #{tpu_custom_call.1} parent=5 // pred_fallthru
        _
      %p132 = scmp.lt.s32.totalorder %s15, 2
      // Predicated region
      $region17: #{tpu_custom_call.1} parent=5 // pred_check
        %p133 = pneg %p132
      $region18: #{tpu_custom_call.1} parent=5 // pred_check_branch
        %135 = sbr.rel (%p133) target = $region20
      $region19: #{tpu_custom_call.1} parent=5 // pred_region
        // Predicated region
        $region21: #{tpu_custom_call.1} parent=19 // pred_check
          %p136 = pneg %p35
        $region22: #{tpu_custom_call.1} parent=19 // pred_check_branch
          %138 = sbr.rel (%p136) target = $region24
        $region23: #{tpu_custom_call.1} parent=19 // pred_region
          %s139 = sand.u32 %s25, 1
          %s140 = scalar_lea.sflag [#allocation3], %s139
          %s141 = sand.u32 %s25, 1
          %s142 = smul.addr %s141, 48
          %s143 = scalar_lea.vmem [#allocation2], %s142
          %s144 = smul.u32 3, %s15
          %s146 = ssub.s32 768, 768
          %147 = vsyncadd %s140, %s146
          %s148 = smul.addr %s144, 2
          %s149 = smul.addr %s148, 128
          %s150 = scalar_lea.hbm %s0, %s149
          %s151 = sshll.u32 %s143, 4
          %s152 = int_to_ptr.vmem [resolvable:$true] %s151
          %157 = dma.hbm_to_vmem [thread:$0]  %s150, 768, %s152, %s140, 256, 256, 16
        $region24: #{tpu_custom_call.1} parent=19 // pred_fallthru
          _
        // Predicated region
        $region25: #{tpu_custom_call.1} parent=19 // pred_check
          %p158 = pneg %p61
        $region26: #{tpu_custom_call.1} parent=19 // pred_check_branch
          %160 = sbr.rel (%p158) target = $region28
        $region27: #{tpu_custom_call.1} parent=19 // pred_region
          %s161 = smul.u32 3, %s15
          %p162 = scmp.lt.s32.totalorder %s161, 5
          %s163 = scalar_select %p162, %s161, 5
          %s164 = smul.addr %s163, 8
          %s165 = scalar_lea.vmem %s1, %s164
          %s166 = smul.u32 3, %s15
        $region28: #{tpu_custom_call.1} parent=19 // pred_fallthru
          _
      $region20: #{tpu_custom_call.1} parent=5 // pred_fallthru
        _
      %p167 = scmp.le.s32.totalorder 1, %s15
      %p168 = scmp.lt.s32.totalorder %s15, 3
      %p169 = pnand %p167, %p168
      %p170 = pneg %p169
      // Predicated region
      $region29: #{tpu_custom_call.1} parent=5 // pred_check
        _
      $region30: #{tpu_custom_call.1} parent=5 // pred_check_branch
        %172 = sbr.rel (%p169) target = $region32
      $region31: #{tpu_custom_call.1} parent=5 // pred_region
        %s173 = ssub.s32 %s15, 1
        %s174 = sand.u32 %s28, 1
        %s175 = scalar_lea.sflag [#allocation3], %s174
        %s176 = sand.u32 %s28, 1
        %s177 = smul.addr %s176, 48
        %s178 = scalar_lea.vmem [#allocation2], %s177
        // Predicated region
        $region33: #{tpu_custom_call.1} parent=31 // pred_check
          %p179 = pneg %p41
        $region34: #{tpu_custom_call.1} parent=31 // pred_check_branch
          %181 = sbr.rel (%p179) target = $region36
        $region35: #{tpu_custom_call.1} parent=31 // pred_region
          %182 = dma.done %s175, 768
        $region36: #{tpu_custom_call.1} parent=31 // pred_fallthru
          _
        %s183 = sand.u32 %s28, 1
        %s184 = scalar_lea.sflag [#allocation3], %s183
        %s185 = sand.u32 %s28, 1
        %s186 = smul.addr %s185, 48
        %s187 = scalar_lea.vmem [#allocation2], %s186
        %p188 = pneg %p41
        %p189 = pneg %p38
        %s190 = smul.u32 3, %s20
        %p191 = scmp.lt.s32.totalorder %s190, 5
        %s192 = scalar_select %p191, %s190, 5
        %s193 = smul.addr %s192, 8
        %s194 = scalar_lea.vmem %s1, %s193
        %p195 = pneg %p67
        %p196 = pneg %p64
        %p197 = pneg %p88
        %p198 = pneg %p85
        %p199 = pneg %p114
        %p200 = pneg %p111
        %s201 = sand.u32 %s101, 1
        %s202 = scalar_lea.sflag [#allocation4], %s201
        %s203 = sand.u32 %s101, 1
        %s204 = smul.addr %s203, 48
        %s205 = scalar_lea.vmem [#allocation5], %s204
        %s206 = smul.u32 3, %s20
        %s207 = smul.u32 3, %s20
        %p208 = scmp.lt.s32.totalorder %s207, 5
        %s209 = scalar_select %p208, %s207, 5
        %s210 = smul.addr %s209, 8
        %s211 = scalar_lea.vmem %s1, %s210
        %s212 = smul.u32 3, %s20
        %s213 = smul.u32 3, %s20
        %v214 = vld [vmem:[%s178] sm:$0x7f]
        %v215 = vld [vmem:[%s178 + $0x8] sm:$0x7f]
        %v216 = vld [vmem:[%s178 + $0x10] sm:$0x7f]
        %v217 = vld [vmem:[%s178 + $0x18] sm:$0x7f]
        %v218 = vld [vmem:[%s178 + $0x20] sm:$0x7f]
        %v219 = vld [vmem:[%s178 + $0x28] sm:$0x7f]
        %v220 = vlaneseq
        %v221 = vshrl.u32 %v220, 7
        %vm222 = vcmp.eq.s32.totalorder %v221, 2
        %vm223 = vcmp.eq.s32.totalorder %v221, 3
        %vm224 = vmor %vm222, %vm223
        %v225 = vsub.f32 0.0, %v214
        %v226 = vsub.f32 0.0, %v215
        %v227 = vsub.f32 0.0, %v216
        %v228 = vsub.f32 0.0, %v217
        %v229 = vsub.f32 0.0, %v218
        %v230 = vsub.f32 0.0, %v219
        %v231 = vsel %vm224, %v214, %v225
        %v232 = vsel %vm224, %v215, %v226
        %v233 = vsel %vm224, %v216, %v227
        %v234 = vsel %vm224, %v217, %v228
        %v235 = vsel %vm224, %v218, %v229
        %v236 = vsel %vm224, %v219, %v230
        %v237 = vmul.f32 %v231, 1.442695
        %v238 = vpow.pop %v237
        %v239 = vmul.f32 %v232, 1.442695
        %v240 = vpow.pop %v239
        %v241 = vmul.f32 %v233, 1.442695
        %v242 = vpow.pop %v241
        %v243 = vmul.f32 %v234, 1.442695
        %v244 = vpow.pop %v243
        %v245 = vmul.f32 %v235, 1.442695
        %v246 = vpow.pop %v245
        %v247 = vmul.f32 %v236, 1.442695
        %v248 = vpow.pop %v247
        %v249 = vadd.f32 %v238, 1.0
        %v250 = vadd.f32 %v240, 1.0
        %v251 = vadd.f32 %v242, 1.0
        %v252 = vadd.f32 %v244, 1.0
        %v253 = vadd.f32 %v246, 1.0
        %v254 = vadd.f32 %v248, 1.0
        %v255 = vrcp.pop %v249
        %v256 = vmul.f32 1.0, %v255
        %v257 = vrcp.pop %v250
        %v258 = vmul.f32 1.0, %v257
        %v259 = vrcp.pop %v251
        %v260 = vmul.f32 1.0, %v259
        %v261 = vrcp.pop %v252
        %v262 = vmul.f32 1.0, %v261
        %v263 = vrcp.pop %v253
        %v264 = vmul.f32 1.0, %v263
        %v265 = vrcp.pop %v254
        %v266 = vmul.f32 1.0, %v265
        %v267 = vsel %vm224, %v238, %v256
        %v268 = vsel %vm224, %v240, %v258
        %v269 = vsel %vm224, %v242, %v260
        %v270 = vsel %vm224, %v244, %v262
        %v271 = vsel %vm224, %v246, %v264
        %v272 = vsel %vm224, %v248, %v266
        %v273 = vld [vmem:[%s211] sm:$0x7f]
        %v274 = vld [vmem:[%s211 + $0x8] sm:$0x7f]
        %v275 = vld [vmem:[%s211 + $0x10] sm:$0x7f]
        %277 = vset.pattern.permute.xlu0 0
        %278 = vperm.xlu0 %277, %v273
        %v279 = vpop.permute.xlu0 %278
        %282 = vset.pattern.permute.xlu0 0
        %283 = vperm.xlu0 %282, %v274
        %v284 = vpop.permute.xlu0 %283
        %287 = vset.pattern.permute.xlu0 0
        %288 = vperm.xlu0 %287, %v275
        %v289 = vpop.permute.xlu0 %288
        %v291 = vmul.f32 %v267, %v279
        %v292 = vmul.f32 %v268, %v279
        %v293 = vmul.f32 %v269, %v284
        %v294 = vmul.f32 %v270, %v284
        %v295 = vmul.f32 %v271, %v289
        %v296 = vmul.f32 %v272, %v289
        %v297 = vld [vmem:[%s2] sm:$0x7f]
        %v298 = vld [vmem:[%s2 + $0x8] sm:$0x7f]
        %v299 = vadd.f32 %v291, %v297
        %v300 = vadd.f32 %v292, %v298
        %v301 = vadd.f32 %v293, %v297
        %v302 = vadd.f32 %v294, %v298
        %v303 = vadd.f32 %v295, %v297
        %v304 = vadd.f32 %v296, %v298
        %305 = vst [vmem:[%s205] sm:$0x7f] %v299
        %306 = vst [vmem:[%s205 + $0x8] sm:$0x7f] %v300
        %307 = vst [vmem:[%s205 + $0x10] sm:$0x7f] %v301
        %308 = vst [vmem:[%s205 + $0x18] sm:$0x7f] %v302
        %309 = vst [vmem:[%s205 + $0x20] sm:$0x7f] %v303
        %310 = vst [vmem:[%s205 + $0x28] sm:$0x7f] %v304
        %s311 = sand.u32 %s101, 1
        %s312 = scalar_lea.sflag [#allocation4], %s311
        %s313 = sand.u32 %s101, 1
        %s314 = smul.addr %s313, 48
        %s315 = scalar_lea.vmem [#allocation5], %s314
        // Predicated region
        $region37: #{tpu_custom_call.1} parent=31 // pred_check
          %p316 = pneg %p111
        $region38: #{tpu_custom_call.1} parent=31 // pred_check_branch
          %318 = sbr.rel (%p316) target = $region40
        $region39: #{tpu_custom_call.1} parent=31 // pred_region
          %s319 = smul.u32 3, %s20
          %s321 = ssub.s32 768, 768
          %322 = vsyncadd %s312, %s321
          %s323 = smul.addr %s319, 2
          %s324 = smul.addr %s323, 128
          %s325 = scalar_lea.hbm %s3, %s324
          %s326 = sshll.u32 %s315, 4
          %s327 = int_to_ptr.vmem [resolvable:$true] %s326
          %332 = dma.vmem_to_hbm [thread:$0]  %s327, 768, %s325, %s312, 256, 256, 16
        $region40: #{tpu_custom_call.1} parent=31 // pred_fallthru
          _
      $region32: #{tpu_custom_call.1} parent=5 // pred_fallthru
        _
      %p333 = scmp.le.s32.totalorder 2, %s15
      // Predicated region
      $region41: #{tpu_custom_call.1} parent=5 // pred_check
        %p334 = pneg %p333
      $region42: #{tpu_custom_call.1} parent=5 // pred_check_branch
        %336 = sbr.rel (%p334) target = $region44
      $region43: #{tpu_custom_call.1} parent=5 // pred_region
        %s337 = ssub.s32 %s15, 2
        // Predicated region
        $region45: #{tpu_custom_call.1} parent=43 // pred_check
          %p338 = pneg %p117
        $region46: #{tpu_custom_call.1} parent=43 // pred_check_branch
          %340 = sbr.rel (%p338) target = $region48
        $region47: #{tpu_custom_call.1} parent=43 // pred_region
          %s341 = sand.u32 %s102, 1
          %s342 = scalar_lea.sflag [#allocation4], %s341
          %s343 = sand.u32 %s102, 1
          %s344 = smul.addr %s343, 48
          %s345 = scalar_lea.vmem [#allocation5], %s344
          %346 = dma.done %s342, 768
        $region48: #{tpu_custom_call.1} parent=43 // pred_fallthru
          _
      $region44: #{tpu_custom_call.1} parent=5 // pred_fallthru
        _
    $region6: #{tpu_custom_call.1} parent=1 // loop_footer
      %s19 = sadd.s32 1, %s15
    $region7: #{tpu_custom_call.1} parent=1 // loop_footer_branch
      %14 = sbr.rel target = $region3
    $region8: #{tpu_custom_call.1} parent=1 // loop_exit
      _
    %347 = vsyncpa [#allocation3], 1
    %s348 = scalar_lea.sflag [#allocation3], 1
    %349 = vsyncpa %s348, 1
    %350 = vsyncpa [#allocation4], 1
    %s351 = scalar_lea.sflag [#allocation4], 1
    %352 = vsyncpa %s351, 1

</llo_original>
